<compile_context>
chip_gen: v7x
topology: tpu7x:2x2x1
jax: 0.10.0
libtpu: 0.0.40
codegen_flags: <defaults>
</compile_context>

<pallas_src>
from typing import NamedTuple

import jax
import jax.numpy as jnp
from jax.experimental import pallas as pl
from jax.experimental.pallas import tpu as pltpu


def _round_up(x, m):
    return ((x + m - 1) // m) * m


# ---------------------------------------------------------------------------
# Kernel body
# ---------------------------------------------------------------------------
def critic_kernel(x_ref, w1_ref, b1_ref, w3_ref, b3_ref, o_ref):
    # State arrives as f32 (no wrapper-side convert); cast on the VPU.
    x = x_ref[...].astype(jnp.bfloat16)
    # Hidden layer: bf16 MXU matmul, f32 accumulate, bias add + ReLU on VPU.
    h = jnp.dot(x, w1_ref[...], preferred_element_type=jnp.float32)
    h = jnp.maximum(h + b1_ref[...], 0.0)            # (tb, Hp) + (1, Hp)
    # Output layer: downcast activations to bf16 for the MXU, f32 accumulate.
    out = jnp.dot(h.astype(jnp.bfloat16), w3_ref[...],
                  preferred_element_type=jnp.float32)
    o_ref[...] = (out + b3_ref[...]).astype(o_ref.dtype)


# ---------------------------------------------------------------------------
# Parameter preparation (done ONCE, reused across millions of forward calls)
# ---------------------------------------------------------------------------
class CriticParams(NamedTuple):
    w1: jax.Array   # (in_dim, hid_p)  bf16, hidden dim zero-padded to lanes
    b1: jax.Array   # (1, hid_p)       f32
    w3: jax.Array   # (hid_p, out_dim) bf16 (output dim NOT padded)
    b3: jax.Array   # (1, out_dim)     f32


def prepare_params(w1, b1, w3, b3):
    """Pad the hidden dim to full MXU lanes and cast weights to bf16 once.

    w1: (in, hid), b1: (hid,), w3: (hid, out), b3: (out,)
    (weights stored pre-transposed vs. torch.nn.Linear)."""
    in_dim, hid = w1.shape
    out_dim = w3.shape[1]
    # 128-lane padding for small critics; 256 multiples once hid > 128 so the
    # 2x256x256 MXUs on v6e/v7x get full tiles (v5e 128x128 tiles 256 cleanly).
    hid_p = _round_up(hid, 256) if hid > 128 else _round_up(hid, 128)

    w1_p = jnp.zeros((in_dim, hid_p), jnp.bfloat16)
    w1_p = w1_p.at[:, :hid].set(w1.astype(jnp.bfloat16))
    b1_p = jnp.zeros((1, hid_p), jnp.float32)
    b1_p = b1_p.at[:, :hid].set(b1.reshape(1, -1).astype(jnp.float32))
    w3_p = jnp.zeros((hid_p, out_dim), jnp.bfloat16)
    w3_p = w3_p.at[:hid, :].set(w3.astype(jnp.bfloat16))
    b3_p = b3.reshape(1, -1).astype(jnp.float32)
    return CriticParams(w1_p, b1_p, w3_p, b3_p)


# ---------------------------------------------------------------------------
# Forward wrapper
# ---------------------------------------------------------------------------
def critic_forward(state, params: CriticParams, *, tile_b_max=4096):
    """state: (B, in) f32.  params: output of prepare_params().
    Returns (B, out) f32."""
    B, in_dim = state.shape
    assert in_dim == params.w1.shape[0]
    hid_p = params.w1.shape[1]
    out_dim = params.w3.shape[1]

    # --- batch tiling: multiples of 16 (bf16 sublane packing) ---------------
    B16 = _round_up(B, 16)
    tb = min(B16, tile_b_max)
    # v7x has 2 TensorCores: once the batch is big enough, give the "parallel"
    # grid axis at least 2 steps so both cores get work (no-op on v5e/v6e).
    if tb == B16 and B16 >= 128:
        tb = _round_up(B16 // 2, 16)
    B_pad = _round_up(B, tb)
    grid = (B_pad // tb,)

    x = state
    if B_pad != B:
        x = jnp.zeros((B_pad, in_dim), state.dtype).at[:B].set(state)

    # --- cost / VMEM bookkeeping --------------------------------------------
    flops = 2 * B_pad * (in_dim * hid_p + hid_p * out_dim)
    weight_bytes = (params.w1.size * 2 + params.b1.size * 4
                    + params.w3.size * 2 + params.b3.size * 4)
    bytes_accessed = (B_pad * in_dim * 4 + weight_bytes + B_pad * out_dim * 4)
    # Double-buffered state/out tiles + (worst case double-buffered) weights.
    vmem_est = 2 * (tb * in_dim * 4 + tb * out_dim * 4) + 2 * weight_bytes
    vmem_limit = None
    if vmem_est > 12 * 1024 * 1024:   # headroom under v5e's 16 MiB scoped default
        vmem_limit = min(120 * 1024 * 1024, 2 * vmem_est)

    cost = pl.CostEstimate(flops=flops, transcendentals=0,
                           bytes_accessed=bytes_accessed)

    def _run(weight_pipeline_mode):
        def const_spec(shape):
            # Constant index_map -> DMA'd once, VMEM-resident across steps.
            if weight_pipeline_mode is None:
                return pl.BlockSpec(shape, lambda i: (0, 0))
            return pl.BlockSpec(shape, lambda i: (0, 0),
                                pipeline_mode=weight_pipeline_mode)

        return pl.pallas_call(
            critic_kernel,
            out_shape=jax.ShapeDtypeStruct((B_pad, out_dim), jnp.float32),
            grid=grid,
            in_specs=[
                # State: one f32 batch tile per grid step (cast in-kernel).
                pl.BlockSpec((tb, in_dim), lambda i: (i, 0)),
                const_spec(params.w1.shape),
                const_spec(params.b1.shape),
                const_spec(params.w3.shape),
                const_spec(params.b3.shape),
            ],
            # Unpadded output block: (tb, out_dim) is legal because out_dim
            # equals the full array dim; write-back is only the useful bytes.
            out_specs=pl.BlockSpec((tb, out_dim), lambda i: (i, 0)),
            compiler_params=pltpu.CompilerParams(
                dimension_semantics=("parallel",),
                vmem_limit_bytes=vmem_limit),
            cost_estimate=cost,
        )(x, params.w1, params.b1, params.w3, params.b3)

    try:
        # Weights never change across grid steps -> single buffer is enough.
        out_padded = _run(pl.Buffered(1))
    except Exception:
        # Fallback for JAX builds where Buffered(1) is rejected by the TPU
        # pipeliner: default (double-buffered) constant-index specs.
        out_padded = _run(None)

    # Row slice only when the batch had to be padded (out_dim is already exact).
    return out_padded if B_pad == B else out_padded[:B]


# ---------------------------------------------------------------------------
# Init + references + smoke test
# ---------------------------------------------------------------------------
def init_params(key, input_dim, hidden_dim, output_dim):
    """Deterministic PyTorch-style (uniform +/- 1/sqrt(fan_in)) init.
    Weights stored as (in_features, out_features) (pre-transposed)."""
    k1, k2, k3, k4 = jax.random.split(key, 4)
    bound1 = 1.0 / (input_dim ** 0.5)
    bound3 = 1.0 / (hidden_dim ** 0.5)
    w1 = jax.random.uniform(k1, (input_dim, hidden_dim), jnp.float32,
                            -bound1, bound1)
    b1 = jax.random.uniform(k2, (hidden_dim,), jnp.float32, -bound1, bound1)
    w3 = jax.random.uniform(k3, (hidden_dim, output_dim), jnp.float32,
                            -bound3, bound3)
    b3 = jax.random.uniform(k4, (output_dim,), jnp.float32, -bound3, bound3)
    return w1, b1, w3, b3


def _ref_bf16(state, w1, b1, w3, b3):
    """Pure-JAX reference with the same bf16-input / f32-accumulate numerics."""
    h = jnp.dot(state.astype(jnp.bfloat16), w1.astype(jnp.bfloat16),
                preferred_element_type=jnp.float32) + b1.reshape(1, -1)
    h = jnp.maximum(h, 0.0)
    return jnp.dot(h.astype(jnp.bfloat16), w3.astype(jnp.bfloat16),
                   preferred_element_type=jnp.float32) + b3.reshape(1, -1)


def _ref_f32(state, w1, b1, w3, b3):
    return jnp.maximum(state @ w1 + b1.reshape(1, -1), 0.0) @ w3 \
        + b3.reshape(1, -1)


if __name__ == "__main__":
    input_dim, hidden_dim, output_dim = 16, 32, 4

    key = jax.random.PRNGKey(0)
    k_state, k_params = jax.random.split(key)
    w1, b1, w3, b3 = init_params(k_params, input_dim, hidden_dim, output_dim)
    params = prepare_params(w1, b1, w3, b3)   # pad / cast ONCE, reuse per call

    # 1) Small batch, single grid step.
    state = jax.random.normal(k_state, (8, input_dim), jnp.float32)
    out = jax.block_until_ready(critic_forward(state, params))
    assert out.shape == (8, output_dim)
    # Tight check vs a reference with identical bf16/f32 numerics.
    assert jnp.allclose(out, _ref_bf16(state, w1, b1, w3, b3),
                        atol=1e-4, rtol=1e-4)
    # Loose check vs the all-f32 PyTorch-equivalent forward (bf16 rounding).
    assert jnp.allclose(out, _ref_f32(state, w1, b1, w3, b3),
                        atol=5e-2, rtol=5e-2)

    # 2) Batch not a tile multiple + small tile: exercises the grid loop,
    #    VMEM-resident weights and padded-row handling.
    state2 = jax.random.normal(jax.random.PRNGKey(1), (24, input_dim),
                               jnp.float32)
    out2 = jax.block_until_ready(critic_forward(state2, params, tile_b_max=16))
    assert out2.shape == (24, output_dim)
    assert jnp.allclose(out2, _ref_bf16(state2, w1, b1, w3, b3),
                        atol=1e-4, rtol=1e-4)

    # 3) Larger batch: exercises the automatic >=2-step "parallel" grid split
    #    (both v7x TensorCores) with row padding sliced off.
    state3 = jax.random.normal(jax.random.PRNGKey(2), (300, input_dim),
                               jnp.float32)
    out3 = jax.block_until_ready(critic_forward(state3, params))
    assert out3.shape == (300, output_dim)
    assert jnp.allclose(out3, _ref_bf16(state3, w1, b1, w3, b3),
                        atol=1e-4, rtol=1e-4)

    print("KERNEL_OK")
</pallas_src>

<mosaic_0001>
module attributes {stable_mosaic.version = 11 : i64} {
  func.func @critic_kernel(%arg0: i32, %arg1: memref<16x16xf32, #tpu.memory_space<vmem>>, %arg2: memref<16x128xbf16, #tpu.memory_space<vmem>>, %arg3: memref<1x128xf32, #tpu.memory_space<vmem>>, %arg4: memref<128x4xbf16, #tpu.memory_space<vmem>>, %arg5: memref<1x4xf32, #tpu.memory_space<vmem>>, %arg6: memref<16x4xf32, #tpu.memory_space<vmem>>) attributes {dimension_semantics = [#tpu.dimension_semantics<parallel>], iteration_bounds = array<i64: 1>, scalar_prefetch = 0 : i64, scratch_operands = 0 : i64, tpu.core_type = #tpu.core_type<tc>, window_params = [{transform_indices = @transform_0, window_bounds = array<i64: 16, 16>}, {pipeline_mode = #tpu.pipeline_mode<synchronous>, transform_indices = @transform_1, window_bounds = array<i64: 16, 128>}, {pipeline_mode = #tpu.pipeline_mode<synchronous>, transform_indices = @transform_2, window_bounds = array<i64: 1, 128>}, {pipeline_mode = #tpu.pipeline_mode<synchronous>, transform_indices = @transform_3, window_bounds = array<i64: 128, 4>}, {pipeline_mode = #tpu.pipeline_mode<synchronous>, transform_indices = @transform_4, window_bounds = array<i64: 1, 4>}, {transform_indices = @transform_5, window_bounds = array<i64: 16, 4>}]} {
    %c0 = arith.constant 0 : index
    %c0_0 = arith.constant 0 : index
    %0 = vector.load %arg1[%c0, %c0_0] : memref<16x16xf32, #tpu.memory_space<vmem>>, vector<16x16xf32>
    %1 = arith.truncf %0 : vector<16x16xf32> to vector<16x16xbf16>
    %c0_1 = arith.constant 0 : index
    %c0_2 = arith.constant 0 : index
    %2 = vector.load %arg2[%c0_1, %c0_2] : memref<16x128xbf16, #tpu.memory_space<vmem>>, vector<16x128xbf16>
    %cst = arith.constant dense<0.000000e+00> : vector<16x128xf32>
    %3 = tpu.matmul %1, %2, %cst {dimension_numbers = #tpu.dot_dimension_numbers<[1], [0], [0], [1], [0, 0, 1, 1], [], []>} : vector<16x16xbf16>, vector<16x128xbf16>, vector<16x128xf32> -> vector<16x128xf32>
    %c0_3 = arith.constant 0 : index
    %c0_4 = arith.constant 0 : index
    %4 = vector.load %arg3[%c0_3, %c0_4] : memref<1x128xf32, #tpu.memory_space<vmem>>, vector<1x128xf32>
    %5 = vector.broadcast %4 : vector<1x128xf32> to vector<16x128xf32>
    %6 = arith.addf %3, %5 : vector<16x128xf32>
    %cst_5 = arith.constant 0.000000e+00 : f32
    %7 = vector.broadcast %cst_5 : f32 to vector<16x128xf32>
    %8 = arith.maximumf %6, %7 : vector<16x128xf32>
    %9 = arith.truncf %8 : vector<16x128xf32> to vector<16x128xbf16>
    %c0_6 = arith.constant 0 : index
    %c0_7 = arith.constant 0 : index
    %10 = vector.load %arg4[%c0_6, %c0_7] : memref<128x4xbf16, #tpu.memory_space<vmem>>, vector<128x4xbf16>
    %cst_8 = arith.constant dense<0.000000e+00> : vector<16x4xf32>
    %11 = tpu.matmul %9, %10, %cst_8 {dimension_numbers = #tpu.dot_dimension_numbers<[1], [0], [0], [1], [0, 0, 1, 1], [], []>} : vector<16x128xbf16>, vector<128x4xbf16>, vector<16x4xf32> -> vector<16x4xf32>
    %c0_9 = arith.constant 0 : index
    %c0_10 = arith.constant 0 : index
    %12 = vector.load %arg5[%c0_9, %c0_10] : memref<1x4xf32, #tpu.memory_space<vmem>>, vector<1x4xf32>
    %13 = vector.broadcast %12 : vector<1x4xf32> to vector<16x4xf32>
    %14 = arith.addf %11, %13 : vector<16x4xf32>
    %c0_11 = arith.constant 0 : index
    %c0_12 = arith.constant 0 : index
    %15 = vector.load %arg6[%c0_11, %c0_12] : memref<16x4xf32, #tpu.memory_space<vmem>>, vector<16x4xf32>
    tpu.vector_store %arg6[%c0_11, %c0_12], %14 {strides = array<i32>} : memref<16x4xf32, #tpu.memory_space<vmem>>, vector<16x4xf32>,
    return
  }
  func.func @transform_0(%arg0: i32) -> (i32, i32) {
    %c0_i32 = arith.constant 0 : i32
    %c0_i32_0 = arith.constant 0 : i32
    return %arg0, %c0_i32 : i32, i32
  }
  func.func @transform_1(%arg0: i32) -> (i32, i32) {
    %c0_i32 = arith.constant 0 : i32
    %c0_i32_0 = arith.constant 0 : i32
    %c0_i32_1 = arith.constant 0 : i32
    return %c0_i32, %c0_i32_0 : i32, i32
  }
  func.func @transform_2(%arg0: i32) -> (i32, i32) {
    %c0_i32 = arith.constant 0 : i32
    %c0_i32_0 = arith.constant 0 : i32
    %c0_i32_1 = arith.constant 0 : i32
    return %c0_i32, %c0_i32_0 : i32, i32
  }
  func.func @transform_3(%arg0: i32) -> (i32, i32) {
    %c0_i32 = arith.constant 0 : i32
    %c0_i32_0 = arith.constant 0 : i32
    %c0_i32_1 = arith.constant 0 : i32
    return %c0_i32, %c0_i32_0 : i32, i32
  }
  func.func @transform_4(%arg0: i32) -> (i32, i32) {
    %c0_i32 = arith.constant 0 : i32
    %c0_i32_0 = arith.constant 0 : i32
    %c0_i32_1 = arith.constant 0 : i32
    return %c0_i32, %c0_i32_0 : i32, i32
  }
  func.func @transform_5(%arg0: i32) -> (i32, i32) {
    %c0_i32 = arith.constant 0 : i32
    %c0_i32_0 = arith.constant 0 : i32
    return %arg0, %c0_i32 : i32, i32
  }
}

module attributes {stable_mosaic.version = 11 : i64} {
  func.func @critic_kernel(%arg0: i32, %arg1: memref<16x16xf32, #tpu.memory_space<vmem>>, %arg2: memref<16x128xbf16, #tpu.memory_space<vmem>>, %arg3: memref<1x128xf32, #tpu.memory_space<vmem>>, %arg4: memref<128x4xbf16, #tpu.memory_space<vmem>>, %arg5: memref<1x4xf32, #tpu.memory_space<vmem>>, %arg6: memref<16x4xf32, #tpu.memory_space<vmem>>) attributes {dimension_semantics = [#tpu.dimension_semantics<parallel>], iteration_bounds = array<i64: 1>, scalar_prefetch = 0 : i64, scratch_operands = 0 : i64, tpu.core_type = #tpu.core_type<tc>, window_params = [{transform_indices = @transform_0, window_bounds = array<i64: 16, 16>}, {pipeline_mode = #tpu.pipeline_mode<synchronous>, transform_indices = @transform_1, window_bounds = array<i64: 16, 128>}, {pipeline_mode = #tpu.pipeline_mode<synchronous>, transform_indices = @transform_2, window_bounds = array<i64: 1, 128>}, {pipeline_mode = #tpu.pipeline_mode<synchronous>, transform_indices = @transform_3, window_bounds = array<i64: 128, 4>}, {pipeline_mode = #tpu.pipeline_mode<synchronous>, transform_indices = @transform_4, window_bounds = array<i64: 1, 4>}, {transform_indices = @transform_5, window_bounds = array<i64: 16, 4>}]} {
    %c0 = arith.constant 0 : index
    %c0_0 = arith.constant 0 : index
    %0 = vector.load %arg1[%c0, %c0_0] : memref<16x16xf32, #tpu.memory_space<vmem>>, vector<16x16xf32>
    %1 = arith.truncf %0 : vector<16x16xf32> to vector<16x16xbf16>
    %c0_1 = arith.constant 0 : index
    %c0_2 = arith.constant 0 : index
    %2 = vector.load %arg2[%c0_1, %c0_2] : memref<16x128xbf16, #tpu.memory_space<vmem>>, vector<16x128xbf16>
    %cst = arith.constant dense<0.000000e+00> : vector<16x128xf32>
    %3 = tpu.matmul %1, %2, %cst {dimension_numbers = #tpu.dot_dimension_numbers<[1], [0], [0], [1], [0, 0, 1, 1], [], []>} : vector<16x16xbf16>, vector<16x128xbf16>, vector<16x128xf32> -> vector<16x128xf32>
    %c0_3 = arith.constant 0 : index
    %c0_4 = arith.constant 0 : index
    %4 = vector.load %arg3[%c0_3, %c0_4] : memref<1x128xf32, #tpu.memory_space<vmem>>, vector<1x128xf32>
    %5 = vector.broadcast %4 : vector<1x128xf32> to vector<16x128xf32>
    %6 = arith.addf %3, %5 : vector<16x128xf32>
    %cst_5 = arith.constant 0.000000e+00 : f32
    %7 = vector.broadcast %cst_5 : f32 to vector<16x128xf32>
    %8 = arith.maximumf %6, %7 : vector<16x128xf32>
    %9 = arith.truncf %8 : vector<16x128xf32> to vector<16x128xbf16>
    %c0_6 = arith.constant 0 : index
    %c0_7 = arith.constant 0 : index
    %10 = vector.load %arg4[%c0_6, %c0_7] : memref<128x4xbf16, #tpu.memory_space<vmem>>, vector<128x4xbf16>
    %cst_8 = arith.constant dense<0.000000e+00> : vector<16x4xf32>
    %11 = tpu.matmul %9, %10, %cst_8 {dimension_numbers = #tpu.dot_dimension_numbers<[1], [0], [0], [1], [0, 0, 1, 1], [], []>} : vector<16x128xbf16>, vector<128x4xbf16>, vector<16x4xf32> -> vector<16x4xf32>
    %c0_9 = arith.constant 0 : index
    %c0_10 = arith.constant 0 : index
    %12 = vector.load %arg5[%c0_9, %c0_10] : memref<1x4xf32, #tpu.memory_space<vmem>>, vector<1x4xf32>
    %13 = vector.broadcast %12 : vector<1x4xf32> to vector<16x4xf32>
    %14 = arith.addf %11, %13 : vector<16x4xf32>
    %c0_11 = arith.constant 0 : index
    %c0_12 = arith.constant 0 : index
    %15 = vector.load %arg6[%c0_11, %c0_12] : memref<16x4xf32, #tpu.memory_space<vmem>>, vector<16x4xf32>
    tpu.vector_store %arg6[%c0_11, %c0_12], %14 {strides = array<i32>} : memref<16x4xf32, #tpu.memory_space<vmem>>, vector<16x4xf32>,
    return
  }
  func.func @transform_0(%arg0: i32) -> (i32, i32) {
    %c0_i32 = arith.constant 0 : i32
    %c0_i32_0 = arith.constant 0 : i32
    return %arg0, %c0_i32 : i32, i32
  }
  func.func @transform_1(%arg0: i32) -> (i32, i32) {
    %c0_i32 = arith.constant 0 : i32
    %c0_i32_0 = arith.constant 0 : i32
    %c0_i32_1 = arith.constant 0 : i32
    return %c0_i32, %c0_i32_0 : i32, i32
  }
  func.func @transform_2(%arg0: i32) -> (i32, i32) {
    %c0_i32 = arith.constant 0 : i32
    %c0_i32_0 = arith.constant 0 : i32
    %c0_i32_1 = arith.constant 0 : i32
    return %c0_i32, %c0_i32_0 : i32, i32
  }
  func.func @transform_3(%arg0: i32) -> (i32, i32) {
    %c0_i32 = arith.constant 0 : i32
    %c0_i32_0 = arith.constant 0 : i32
    %c0_i32_1 = arith.constant 0 : i32
    return %c0_i32, %c0_i32_0 : i32, i32
  }
  func.func @transform_4(%arg0: i32) -> (i32, i32) {
    %c0_i32 = arith.constant 0 : i32
    %c0_i32_0 = arith.constant 0 : i32
    %c0_i32_1 = arith.constant 0 : i32
    return %c0_i32, %c0_i32_0 : i32, i32
  }
  func.func @transform_5(%arg0: i32) -> (i32, i32) {
    %c0_i32 = arith.constant 0 : i32
    %c0_i32_0 = arith.constant 0 : i32
    return %arg0, %c0_i32 : i32, i32
  }
}

</mosaic_0001>

<llo_original>
// kernel: tpu_custom_call.1
$region0: #{tpu_custom_call.1}
  #allocation0 [shape = 'u32[]', space=smem, size = 0x4, offset = 0x4, fixed_abs, tag = 'smem constant byte address 0x4 - core index']
  #allocation1 [shape = 'u32[144,128]{1,0:T(1,128)}', space=vmem, size = 0x12000, scoped, tag = 'internal scratch']
  %s0 = inlined_call_operand.vmem [shape: f32[16,16], index: 0, kind: input, shape index: {}]
  %s1 = inlined_call_operand.vmem [shape: bf16[16,128], index: 1, kind: input, shape index: {}]
  %s2 = inlined_call_operand.vmem [shape: f32[1,128], index: 2, kind: input, shape index: {}]
  %s3 = inlined_call_operand.vmem [shape: bf16[128,4], index: 3, kind: input, shape index: {}]
  %s4 = inlined_call_operand.vmem [shape: f32[1,4], index: 4, kind: input, shape index: {}]
  %s5 = inlined_call_operand.vmem [shape: f32[16,4], index: 5, kind: output, shape index: {}]
  %s6 = sld [smem:[#allocation0]]
  $region30: #{tpu_custom_call.1} parent=0
    _
  %s8 = ssub.s32 1, %s6
  %s9 = scalar_select 0, %s8, %s6
  // Predicated region
  $region2: #{tpu_custom_call.1} parent=0 // pred_check
    _
  $region3: #{tpu_custom_call.1} parent=0 // pred_check_branch
    %11 = sbr.rel (0) target = $region5
  $region4: #{tpu_custom_call.1} parent=0 // pred_region
    _
  $region5: #{tpu_custom_call.1} parent=0 // pred_fallthru
    _
  // Predicated region
  $region6: #{tpu_custom_call.1} parent=0 // pred_check
    _
  $region7: #{tpu_custom_call.1} parent=0 // pred_check_branch
    %13 = sbr.rel (0) target = $region9
  $region8: #{tpu_custom_call.1} parent=0 // pred_region
    _
  $region9: #{tpu_custom_call.1} parent=0 // pred_fallthru
    _
  // Predicated region
  $region10: #{tpu_custom_call.1} parent=0 // pred_check
    _
  $region11: #{tpu_custom_call.1} parent=0 // pred_check_branch
    %15 = sbr.rel (0) target = $region13
  $region12: #{tpu_custom_call.1} parent=0 // pred_region
    _
  $region13: #{tpu_custom_call.1} parent=0 // pred_fallthru
    _
  // Predicated region
  $region14: #{tpu_custom_call.1} parent=0 // pred_check
    _
  $region15: #{tpu_custom_call.1} parent=0 // pred_check_branch
    %17 = sbr.rel (0) target = $region17
  $region16: #{tpu_custom_call.1} parent=0 // pred_region
    _
  $region17: #{tpu_custom_call.1} parent=0 // pred_fallthru
    _
  // Predicated region
  $region18: #{tpu_custom_call.1} parent=0 // pred_check
    _
  $region19: #{tpu_custom_call.1} parent=0 // pred_check_branch
    %19 = sbr.rel (0) target = $region21
  $region20: #{tpu_custom_call.1} parent=0 // pred_region
    _
  $region21: #{tpu_custom_call.1} parent=0 // pred_fallthru
    _
  %v21 = vld [vmem:[%s0] sm:$0xff]
  %v22 = vld [vmem:[%s0 + $0x8] sm:$0xff]
  %v23 = vpack.c.bf16 %v22, %v21
  %v24 = vld [vmem:[%s1] sm:$0xf]
  %v25 = vld [vmem:[%s1 + $0x4] sm:$0xf]
  %v26 = vld [vmem:[%s2] sm:$0x1]
  %v28 = vlaneseq
  %v29 = vshrl.u32 %v28, 7
  %v30 = vsub.s32 0, %v29
  %v31 = vrot.slane %v26, %v30
  %v35 = vunpack.c.l.b16 %v24
  %v36 = vunpack.c.l.b16 %v25
  %v37 = vpack.c.b16 %v36, %v35
  %vm39 = vcmask 130048
  %v41 = vsel %vm39, %v23, 0
  %43 = vmatprep.subr.bf16.mxu0 0
  %44 = vmatpush1.bf16.msra.mxu0 %v37
  %45 = vmatprep.subr.bf16.mxu0 0
  %46 = vmatpush1.bf16.msra.mxu0 0
  %47 = vmatprep.subr.bf16.mxu0 0
  %48 = vmatpush1.bf16.msra.mxu0 0
  %49 = vmatprep.subr.bf16.mxu0 0
  %50 = vmatpush1.bf16.msra.mxu0 0
  %51 = vmatprep.subr.bf16.mxu0 0
  %52 = vmatpush1.bf16.msra.mxu0 0
  %53 = vmatprep.subr.bf16.mxu0 0
  %54 = vmatpush1.bf16.msra.mxu0 0
  %55 = vmatprep.subr.bf16.mxu0 0
  %56 = vmatpush1.bf16.msra.mxu0 0
  %57 = vmatprep.subr.bf16.mxu0 0
  %58 = vmatpush1.bf16.msra.mxu0 0
  %59 = vmatprep.subr.bf16.mxu0 0
  %60 = vmatpush1.bf16.msra.mxu0 0
  %61 = vmatprep.subr.bf16.mxu0 0
  %62 = vmatpush1.bf16.msra.mxu0 0
  %63 = vmatprep.subr.bf16.mxu0 0
  %64 = vmatpush1.bf16.msra.mxu0 0
  %65 = vmatprep.subr.bf16.mxu0 0
  %66 = vmatpush1.bf16.msra.mxu0 0
  %67 = vmatprep.subr.bf16.mxu0 0
  %68 = vmatpush1.bf16.msra.mxu0 0
  %69 = vmatprep.subr.bf16.mxu0 0
  %70 = vmatpush1.bf16.msra.mxu0 0
  %71 = vmatprep.subr.bf16.mxu0 0
  %72 = vmatpush1.bf16.msra.mxu0 0
  %73 = vmatprep.subr.bf16.mxu0 0
  %74 = vmatpush1.bf16.msra.mxu0 0
  %75 = vmatprep.mubr.bf16.mxu0 0
  %76 = vmatmul.mubr.bf16.gmra.mrb[0].mxu0 %v41
  %v77 = vpop.f32.mrb[0].mxu0
  %v78 = vadd.f32 %v31, %v77
  %v79 = vpop.f32.mrb[0].mxu0
  %v80 = vpop.f32.mrb[0].mxu0
  %v81 = vadd.f32 %v31, %v80
  %v82 = vpop.f32.mrb[0].mxu0
  %83 = vdwg.mxu0
  %v84 = vmax.f32 %v78, 0.0
  %v85 = vmax.f32 %v81, 0.0
  %v86 = vpack.c.bf16 %v85, %v84
  %v87 = vld [vmem:[%s3] sm:$0xf]
  %v88 = vld [vmem:[%s3 + $0x4] sm:$0xf]
  %v89 = vld [vmem:[%s3 + $0x8] sm:$0xf]
  %v90 = vld [vmem:[%s3 + $0xc] sm:$0xf]
  %v91 = vld [vmem:[%s3 + $0x10] sm:$0xf]
  %v92 = vld [vmem:[%s3 + $0x14] sm:$0xf]
  %v93 = vld [vmem:[%s3 + $0x18] sm:$0xf]
  %v94 = vld [vmem:[%s3 + $0x1c] sm:$0xf]
  %v95 = vld [vmem:[%s3 + $0x20] sm:$0xf]
  %v96 = vld [vmem:[%s3 + $0x24] sm:$0xf]
  %v97 = vld [vmem:[%s3 + $0x28] sm:$0xf]
  %v98 = vld [vmem:[%s3 + $0x2c] sm:$0xf]
  %v99 = vld [vmem:[%s3 + $0x30] sm:$0xf]
  %v100 = vld [vmem:[%s3 + $0x34] sm:$0xf]
  %v101 = vld [vmem:[%s3 + $0x38] sm:$0xf]
  %v102 = vld [vmem:[%s3 + $0x3c] sm:$0xf]
  %v103 = vld [vmem:[%s4] sm:$0x1]
  %v105 = vlaneseq
  %v106 = vshrl.u32 %v105, 7
  %v107 = vsub.s32 0, %v106
  %v108 = vrot.slane %v103, %v107
  %v126 = vunpack.c.l.b16 %v87
  %v127 = vunpack.c.l.b16 %v88
  %v128 = vunpack.c.l.b16 %v89
  %v129 = vunpack.c.l.b16 %v90
  %v130 = vunpack.c.l.b16 %v91
  %v131 = vunpack.c.l.b16 %v92
  %v132 = vunpack.c.l.b16 %v93
  %v133 = vunpack.c.l.b16 %v94
  %v134 = vunpack.c.l.b16 %v95
  %v135 = vunpack.c.l.b16 %v96
  %v136 = vunpack.c.l.b16 %v97
  %v137 = vunpack.c.l.b16 %v98
  %v138 = vunpack.c.l.b16 %v99
  %v139 = vunpack.c.l.b16 %v100
  %v140 = vunpack.c.l.b16 %v101
  %v141 = vunpack.c.l.b16 %v102
  %v142 = vpack.c.b16 %v127, %v126
  %v143 = vpack.c.b16 %v129, %v128
  %v144 = vpack.c.b16 %v131, %v130
  %v145 = vpack.c.b16 %v133, %v132
  %v146 = vpack.c.b16 %v135, %v134
  %v147 = vpack.c.b16 %v137, %v136
  %v148 = vpack.c.b16 %v139, %v138
  %v149 = vpack.c.b16 %v141, %v140
  %158 = vmatprep.subr.bf16.mxu0 0
  %159 = vmatpush1.bf16.msra.mxu0 %v142
  %160 = vmatprep.subr.bf16.mxu0 0
  %161 = vmatpush1.bf16.msra.mxu0 %v143
  %162 = vmatprep.subr.bf16.mxu0 0
  %163 = vmatpush1.bf16.msra.mxu0 %v144
  %164 = vmatprep.subr.bf16.mxu0 0
  %165 = vmatpush1.bf16.msra.mxu0 %v145
  %166 = vmatprep.subr.bf16.mxu0 0
  %167 = vmatpush1.bf16.msra.mxu0 %v146
  %168 = vmatprep.subr.bf16.mxu0 0
  %169 = vmatpush1.bf16.msra.mxu0 %v147
  %170 = vmatprep.subr.bf16.mxu0 0
  %171 = vmatpush1.bf16.msra.mxu0 %v148
  %172 = vmatprep.subr.bf16.mxu0 0
  %173 = vmatpush1.bf16.msra.mxu0 %v149
  %174 = vmatprep.subr.bf16.mxu0 0
  %175 = vmatpush1.bf16.msra.mxu0 0
  %176 = vmatprep.subr.bf16.mxu0 0
  %177 = vmatpush1.bf16.msra.mxu0 0
  %178 = vmatprep.subr.bf16.mxu0 0
  %179 = vmatpush1.bf16.msra.mxu0 0
  %180 = vmatprep.subr.bf16.mxu0 0
  %181 = vmatpush1.bf16.msra.mxu0 0
  %182 = vmatprep.subr.bf16.mxu0 0
  %183 = vmatpush1.bf16.msra.mxu0 0
  %184 = vmatprep.subr.bf16.mxu0 0
  %185 = vmatpush1.bf16.msra.mxu0 0
  %186 = vmatprep.subr.bf16.mxu0 0
  %187 = vmatpush1.bf16.msra.mxu0 0
  %188 = vmatprep.subr.bf16.mxu0 0
  %189 = vmatpush1.bf16.msra.mxu0 0
  %190 = vmatprep.mubr.bf16.mxu0 0
  %191 = vmatmul.mubr.bf16.gmra.mrb[0].mxu0 %v86
  %v192 = vpop.f32.mrb[0].mxu0
  %v193 = vadd.f32 %v108, %v192
  %v194 = vpop.f32.mrb[0].mxu0
  %v195 = vpop.f32.mrb[0].mxu0
  %v196 = vadd.f32 %v108, %v195
  %v197 = vpop.f32.mrb[0].mxu0
  %198 = vdwg.mxu0
  %vm199 = vcmask 31744
  %200 = vst.msk [vmem:[%s5] sm:$0xff] %vm199, %v193
  %201 = vst.msk [vmem:[%s5 + $0x8] sm:$0xff] %vm199, %v196
  // Predicated region
  $region22: #{tpu_custom_call.1} parent=0 // pred_check
    _
  $region23: #{tpu_custom_call.1} parent=0 // pred_check_branch
    %203 = sbr.rel (0) target = $region25
  $region24: #{tpu_custom_call.1} parent=0 // pred_region
    _
  $region25: #{tpu_custom_call.1} parent=0 // pred_fallthru
    _
  // Predicated region
  $region26: #{tpu_custom_call.1} parent=0 // pred_check
    _
  $region27: #{tpu_custom_call.1} parent=0 // pred_check_branch
    %205 = sbr.rel (0) target = $region29
  $region28: #{tpu_custom_call.1} parent=0 // pred_region
    _
  $region29: #{tpu_custom_call.1} parent=0 // pred_fallthru
    _

// kernel: tpu_custom_call.1
$region0: #{tpu_custom_call.1}
  #allocation0 [shape = 'u32[]', space=smem, size = 0x4, offset = 0x4, fixed_abs, tag = 'smem constant byte address 0x4 - core index']
  #allocation1 [shape = 'u32[144,128]{1,0:T(1,128)}', space=vmem, size = 0x12000, scoped, tag = 'internal scratch']
  %s0 = inlined_call_operand.vmem [shape: f32[16,16], index: 0, kind: input, shape index: {}]
  %s1 = inlined_call_operand.vmem [shape: bf16[16,128], index: 1, kind: input, shape index: {}]
  %s2 = inlined_call_operand.vmem [shape: f32[1,128], index: 2, kind: input, shape index: {}]
  %s3 = inlined_call_operand.vmem [shape: bf16[128,4], index: 3, kind: input, shape index: {}]
  %s4 = inlined_call_operand.vmem [shape: f32[1,4], index: 4, kind: input, shape index: {}]
  %s5 = inlined_call_operand.vmem [shape: f32[16,4], index: 5, kind: output, shape index: {}]
  %s6 = sld [smem:[#allocation0]]
  $region30: #{tpu_custom_call.1} parent=0
    _
  %s8 = ssub.s32 1, %s6
  %s9 = scalar_select 0, %s8, %s6
  // Predicated region
  $region2: #{tpu_custom_call.1} parent=0 // pred_check
    _
  $region3: #{tpu_custom_call.1} parent=0 // pred_check_branch
    %11 = sbr.rel (0) target = $region5
  $region4: #{tpu_custom_call.1} parent=0 // pred_region
    _
  $region5: #{tpu_custom_call.1} parent=0 // pred_fallthru
    _
  // Predicated region
  $region6: #{tpu_custom_call.1} parent=0 // pred_check
    _
  $region7: #{tpu_custom_call.1} parent=0 // pred_check_branch
    %13 = sbr.rel (0) target = $region9
  $region8: #{tpu_custom_call.1} parent=0 // pred_region
    _
  $region9: #{tpu_custom_call.1} parent=0 // pred_fallthru
    _
  // Predicated region
  $region10: #{tpu_custom_call.1} parent=0 // pred_check
    _
  $region11: #{tpu_custom_call.1} parent=0 // pred_check_branch
    %15 = sbr.rel (0) target = $region13
  $region12: #{tpu_custom_call.1} parent=0 // pred_region
    _
  $region13: #{tpu_custom_call.1} parent=0 // pred_fallthru
    _
  // Predicated region
  $region14: #{tpu_custom_call.1} parent=0 // pred_check
    _
  $region15: #{tpu_custom_call.1} parent=0 // pred_check_branch
    %17 = sbr.rel (0) target = $region17
  $region16: #{tpu_custom_call.1} parent=0 // pred_region
    _
  $region17: #{tpu_custom_call.1} parent=0 // pred_fallthru
    _
  // Predicated region
  $region18: #{tpu_custom_call.1} parent=0 // pred_check
    _
  $region19: #{tpu_custom_call.1} parent=0 // pred_check_branch
    %19 = sbr.rel (0) target = $region21
  $region20: #{tpu_custom_call.1} parent=0 // pred_region
    _
  $region21: #{tpu_custom_call.1} parent=0 // pred_fallthru
    _
  %v21 = vld [vmem:[%s0] sm:$0xff]
  %v22 = vld [vmem:[%s0 + $0x8] sm:$0xff]
  %v23 = vpack.c.bf16 %v22, %v21
  %v24 = vld [vmem:[%s1] sm:$0xf]
  %v25 = vld [vmem:[%s1 + $0x4] sm:$0xf]
  %v26 = vld [vmem:[%s2] sm:$0x1]
  %v28 = vlaneseq
  %v29 = vshrl.u32 %v28, 7
  %v30 = vsub.s32 0, %v29
  %v31 = vrot.slane %v26, %v30
  %v35 = vunpack.c.l.b16 %v24
  %v36 = vunpack.c.l.b16 %v25
  %v37 = vpack.c.b16 %v36, %v35
  %vm39 = vcmask 130048
  %v41 = vsel %vm39, %v23, 0
  %43 = vmatprep.subr.bf16.mxu0 0
  %44 = vmatpush1.bf16.msra.mxu0 %v37
  %45 = vmatprep.subr.bf16.mxu0 0
  %46 = vmatpush1.bf16.msra.mxu0 0
  %47 = vmatprep.subr.bf16.mxu0 0
  %48 = vmatpush1.bf16.msra.mxu0 0
  %49 = vmatprep.subr.bf16.mxu0 0
  %50 = vmatpush1.bf16.msra.mxu0 0
  %51 = vmatprep.subr.bf16.mxu0 0
  %52 = vmatpush1.bf16.msra.mxu0 0
  %53 = vmatprep.subr.bf16.mxu0 0
  %54 = vmatpush1.bf16.msra.mxu0 0
  %55 = vmatprep.subr.bf16.mxu0 0
  %56 = vmatpush1.bf16.msra.mxu0 0
  %57 = vmatprep.subr.bf16.mxu0 0
  %58 = vmatpush1.bf16.msra.mxu0 0
  %59 = vmatprep.subr.bf16.mxu0 0
  %60 = vmatpush1.bf16.msra.mxu0 0
  %61 = vmatprep.subr.bf16.mxu0 0
  %62 = vmatpush1.bf16.msra.mxu0 0
  %63 = vmatprep.subr.bf16.mxu0 0
  %64 = vmatpush1.bf16.msra.mxu0 0
  %65 = vmatprep.subr.bf16.mxu0 0
  %66 = vmatpush1.bf16.msra.mxu0 0
  %67 = vmatprep.subr.bf16.mxu0 0
  %68 = vmatpush1.bf16.msra.mxu0 0
  %69 = vmatprep.subr.bf16.mxu0 0
  %70 = vmatpush1.bf16.msra.mxu0 0
  %71 = vmatprep.subr.bf16.mxu0 0
  %72 = vmatpush1.bf16.msra.mxu0 0
  %73 = vmatprep.subr.bf16.mxu0 0
  %74 = vmatpush1.bf16.msra.mxu0 0
  %75 = vmatprep.mubr.bf16.mxu0 0
  %76 = vmatmul.mubr.bf16.gmra.mrb[0].mxu0 %v41
  %v77 = vpop.f32.mrb[0].mxu0
  %v78 = vadd.f32 %v31, %v77
  %v79 = vpop.f32.mrb[0].mxu0
  %v80 = vpop.f32.mrb[0].mxu0
  %v81 = vadd.f32 %v31, %v80
  %v82 = vpop.f32.mrb[0].mxu0
  %83 = vdwg.mxu0
  %v84 = vmax.f32 %v78, 0.0
  %v85 = vmax.f32 %v81, 0.0
  %v86 = vpack.c.bf16 %v85, %v84
  %v87 = vld [vmem:[%s3] sm:$0xf]
  %v88 = vld [vmem:[%s3 + $0x4] sm:$0xf]
  %v89 = vld [vmem:[%s3 + $0x8] sm:$0xf]
  %v90 = vld [vmem:[%s3 + $0xc] sm:$0xf]
  %v91 = vld [vmem:[%s3 + $0x10] sm:$0xf]
  %v92 = vld [vmem:[%s3 + $0x14] sm:$0xf]
  %v93 = vld [vmem:[%s3 + $0x18] sm:$0xf]
  %v94 = vld [vmem:[%s3 + $0x1c] sm:$0xf]
  %v95 = vld [vmem:[%s3 + $0x20] sm:$0xf]
  %v96 = vld [vmem:[%s3 + $0x24] sm:$0xf]
  %v97 = vld [vmem:[%s3 + $0x28] sm:$0xf]
  %v98 = vld [vmem:[%s3 + $0x2c] sm:$0xf]
  %v99 = vld [vmem:[%s3 + $0x30] sm:$0xf]
  %v100 = vld [vmem:[%s3 + $0x34] sm:$0xf]
  %v101 = vld [vmem:[%s3 + $0x38] sm:$0xf]
  %v102 = vld [vmem:[%s3 + $0x3c] sm:$0xf]
  %v103 = vld [vmem:[%s4] sm:$0x1]
  %v105 = vlaneseq
  %v106 = vshrl.u32 %v105, 7
  %v107 = vsub.s32 0, %v106
  %v108 = vrot.slane %v103, %v107
  %v126 = vunpack.c.l.b16 %v87
  %v127 = vunpack.c.l.b16 %v88
  %v128 = vunpack.c.l.b16 %v89
  %v129 = vunpack.c.l.b16 %v90
  %v130 = vunpack.c.l.b16 %v91
  %v131 = vunpack.c.l.b16 %v92
  %v132 = vunpack.c.l.b16 %v93
  %v133 = vunpack.c.l.b16 %v94
  %v134 = vunpack.c.l.b16 %v95
  %v135 = vunpack.c.l.b16 %v96
  %v136 = vunpack.c.l.b16 %v97
  %v137 = vunpack.c.l.b16 %v98
  %v138 = vunpack.c.l.b16 %v99
  %v139 = vunpack.c.l.b16 %v100
  %v140 = vunpack.c.l.b16 %v101
  %v141 = vunpack.c.l.b16 %v102
  %v142 = vpack.c.b16 %v127, %v126
  %v143 = vpack.c.b16 %v129, %v128
  %v144 = vpack.c.b16 %v131, %v130
  %v145 = vpack.c.b16 %v133, %v132
  %v146 = vpack.c.b16 %v135, %v134
  %v147 = vpack.c.b16 %v137, %v136
  %v148 = vpack.c.b16 %v139, %v138
  %v149 = vpack.c.b16 %v141, %v140
  %158 = vmatprep.subr.bf16.mxu0 0
  %159 = vmatpush1.bf16.msra.mxu0 %v142
  %160 = vmatprep.subr.bf16.mxu0 0
  %161 = vmatpush1.bf16.msra.mxu0 %v143
  %162 = vmatprep.subr.bf16.mxu0 0
  %163 = vmatpush1.bf16.msra.mxu0 %v144
  %164 = vmatprep.subr.bf16.mxu0 0
  %165 = vmatpush1.bf16.msra.mxu0 %v145
  %166 = vmatprep.subr.bf16.mxu0 0
  %167 = vmatpush1.bf16.msra.mxu0 %v146
  %168 = vmatprep.subr.bf16.mxu0 0
  %169 = vmatpush1.bf16.msra.mxu0 %v147
  %170 = vmatprep.subr.bf16.mxu0 0
  %171 = vmatpush1.bf16.msra.mxu0 %v148
  %172 = vmatprep.subr.bf16.mxu0 0
  %173 = vmatpush1.bf16.msra.mxu0 %v149
  %174 = vmatprep.subr.bf16.mxu0 0
  %175 = vmatpush1.bf16.msra.mxu0 0
  %176 = vmatprep.subr.bf16.mxu0 0
  %177 = vmatpush1.bf16.msra.mxu0 0
  %178 = vmatprep.subr.bf16.mxu0 0
  %179 = vmatpush1.bf16.msra.mxu0 0
  %180 = vmatprep.subr.bf16.mxu0 0
  %181 = vmatpush1.bf16.msra.mxu0 0
  %182 = vmatprep.subr.bf16.mxu0 0
  %183 = vmatpush1.bf16.msra.mxu0 0
  %184 = vmatprep.subr.bf16.mxu0 0
  %185 = vmatpush1.bf16.msra.mxu0 0
  %186 = vmatprep.subr.bf16.mxu0 0
  %187 = vmatpush1.bf16.msra.mxu0 0
  %188 = vmatprep.subr.bf16.mxu0 0
  %189 = vmatpush1.bf16.msra.mxu0 0
  %190 = vmatprep.mubr.bf16.mxu0 0
  %191 = vmatmul.mubr.bf16.gmra.mrb[0].mxu0 %v86
  %v192 = vpop.f32.mrb[0].mxu0
  %v193 = vadd.f32 %v108, %v192
  %v194 = vpop.f32.mrb[0].mxu0
  %v195 = vpop.f32.mrb[0].mxu0
  %v196 = vadd.f32 %v108, %v195
  %v197 = vpop.f32.mrb[0].mxu0
  %198 = vdwg.mxu0
  %vm199 = vcmask 31744
  %200 = vst.msk [vmem:[%s5] sm:$0xff] %vm199, %v193
  %201 = vst.msk [vmem:[%s5 + $0x8] sm:$0xff] %vm199, %v196
  // Predicated region
  $region22: #{tpu_custom_call.1} parent=0 // pred_check
    _
  $region23: #{tpu_custom_call.1} parent=0 // pred_check_branch
    %203 = sbr.rel (0) target = $region25
  $region24: #{tpu_custom_call.1} parent=0 // pred_region
    _
  $region25: #{tpu_custom_call.1} parent=0 // pred_fallthru
    _
  // Predicated region
  $region26: #{tpu_custom_call.1} parent=0 // pred_check
    _
  $region27: #{tpu_custom_call.1} parent=0 // pred_check_branch
    %205 = sbr.rel (0) target = $region29
  $region28: #{tpu_custom_call.1} parent=0 // pred_region
    _
  $region29: #{tpu_custom_call.1} parent=0 // pred_fallthru
    _

</llo_original>
